<compile_context>
chip_gen: v6e
topology: v6e:2x2x1
jax: 0.10.0
libtpu: 0.0.40
codegen_flags: <defaults>
</compile_context>

<pallas_src>
import functools

import jax
import jax.numpy as jnp
from jax.experimental import pallas as pl
from jax.experimental.pallas import tpu as pltpu


def _round_up(x, m):
    return ((x + m - 1) // m) * m


def _lbm_generate_kernel(h_ref, w_ref, b_ref, o_ref, *, scale):
    """One (tile_m, tile_n) output tile of sigmoid((h @ W + b) * scale)."""
    # MXU matmul, f32 accumulation (operands may be bf16).
    logits = jnp.dot(h_ref[...], w_ref[...], preferred_element_type=jnp.float32)
    logits = (logits + b_ref[...]) * scale
    # Exact sigmoid via a single EUP op: sigmoid(x) = 0.5*tanh(0.5*x) + 0.5.
    # (No approx-reciprocal error, no exp overflow path.)
    o_ref[...] = (0.5 * jnp.tanh(0.5 * logits) + 0.5).astype(o_ref.dtype)


def prepare_lbm_params(W, b, *, compute_dtype=jnp.bfloat16, tile_n=256):
    """One-time cast + V-pad of (W, b) so each generate() call does no extra
    HBM pass over W.  Returns (w_prepared, b_prepared_2d, V, tile_n)."""
    H, V = W.shape
    assert b.shape == (V,)
    tile_n = min(tile_n, _round_up(V, 128))
    Vp = _round_up(V, tile_n)
    w = W.astype(compute_dtype)
    bias = b.astype(jnp.float32)
    if Vp != V:
        w = jnp.pad(w, ((0, 0), (0, Vp - V)))
        bias = jnp.pad(bias, (0, Vp - V))
    return w, bias.reshape(1, Vp), V, tile_n


def lbm_generate_prepared(hidden, w_p, b_p, V, scale=1.0, *, spin=False,
                          tile_m=128, tile_n=None, out_dtype=None):
    """P(V) = sigmoid((hidden @ W + b) * scale) with pre-prepared (W, b).

    hidden: (B, H) float array
    w_p:    (H, Vp) prepared weights (compute dtype, V padded to tile_n)
    b_p:    (1, Vp) prepared bias (f32)
    returns (B, V) array in out_dtype (defaults to w_p.dtype).
    """
    B, H = hidden.shape
    Hw, Vp = w_p.shape
    assert Hw == H and b_p.shape == (1, Vp)
    compute_dtype = w_p.dtype
    out_dtype = compute_dtype if out_dtype is None else out_dtype

    if tile_n is None:
        tile_n = min(256, Vp)
    assert Vp % tile_n == 0

    in_bytes = jnp.dtype(compute_dtype).itemsize
    out_bytes = jnp.dtype(out_dtype).itemsize
    sub = 16 if compute_dtype == jnp.bfloat16 else 8

    # Single batch tile when the whole hidden block is small: hidden is DMA'd
    # exactly once and the inner grid axis collapses to length 1.
    Bp_small = _round_up(B, sub)
    if Bp_small * H * in_bytes <= (2 << 20):
        tile_m = Bp_small
    else:
        tile_m = min(tile_m, Bp_small)
    Bp = _round_up(B, tile_m)

    h = hidden.astype(compute_dtype)
    if Bp != B:
        h = jnp.pad(h, ((0, Bp - B), (0, 0)))

    # VMEM budget: double-buffered hidden / W / bias tiles + output tile,
    # capped by the actual chip's VMEM (safe default if unavailable).
    vmem_need = 2 * (tile_m * H * in_bytes        # hidden tile
                     + H * tile_n * in_bytes      # W column tile
                     + 8 * tile_n * 4             # bias row (sublane-padded)
                     + tile_m * tile_n * out_bytes)
    try:
        cap = int(0.7 * pltpu.get_tpu_info().vmem_capacity_bytes)
    except Exception:
        cap = 40 << 20   # conservative: fits v7x's 64 MiB/TC with headroom
    vmem_limit = int(min(max(vmem_need + (4 << 20), 16 << 20), cap))

    # Fold scale (and the SPIN factor of 2) in as a compile-time constant.
    scale_eff = float(scale) * (2.0 if spin else 1.0)
    kernel = functools.partial(_lbm_generate_kernel, scale=scale_eff)

    # V-tile axis OUTER so each W/bias block is revisited (no re-DMA) while
    # the batch axis sweeps; both axes independent -> "parallel".
    grid = (Vp // tile_n, Bp // tile_m)
    out = pl.pallas_call(
        kernel,
        out_shape=jax.ShapeDtypeStruct((Bp, Vp), out_dtype),
        grid_spec=pl.GridSpec(
            grid=grid,
            in_specs=[
                pl.BlockSpec((tile_m, H), lambda j, i: (i, 0)),   # hidden tile
                pl.BlockSpec((H, tile_n), lambda j, i: (0, j)),   # W column tile
                pl.BlockSpec((1, tile_n), lambda j, i: (0, j)),   # bias slice
            ],
            out_specs=pl.BlockSpec((tile_m, tile_n), lambda j, i: (i, j)),
        ),
        compiler_params=pltpu.CompilerParams(
            dimension_semantics=("parallel", "parallel"),
            vmem_limit_bytes=vmem_limit),
    )(h, w_p, b_p)

    if Bp != B or Vp != V:
        out = out[:B, :V]
    return out


def lbm_generate(hidden, W, b, scale=1.0, *, spin=False, tile_m=128,
                 tile_n=256, compute_dtype=jnp.bfloat16, out_dtype=None):
    """Convenience one-shot API (prepares W/b on every call).  Prefer caching
    prepare_lbm_params() results (as LimitedBoltzmannMachineJAX does)."""
    w_p, b_p, V, tile_n = prepare_lbm_params(
        W, b, compute_dtype=compute_dtype, tile_n=tile_n)
    return lbm_generate_prepared(hidden, w_p, b_p, V, scale, spin=spin,
                                 tile_m=tile_m, tile_n=tile_n,
                                 out_dtype=out_dtype)


class LimitedBoltzmannMachineJAX:
    """Deterministic-parameter JAX port of LimitedBoltzmannMachine (BINARY)."""

    def __init__(self, V, H, key, lin_range=(-0.1, 0.1), quad_range=(-0.1, 0.1),
                 compute_dtype=jnp.bfloat16):
        self.V = V
        self.H = H
        k_b, k_c, k_hh, k_w = jax.random.split(key, 4)
        lin_lo, lin_hi = lin_range
        quad_lo, quad_hi = quad_range
        self.b = jax.random.uniform(k_b, (V,), jnp.float32, lin_lo, lin_hi)
        self.c = jax.random.uniform(k_c, (H,), jnp.float32, lin_lo, lin_hi)
        self.vv = None
        self.hh = jax.random.uniform(k_hh, (H * (H - 1) // 2,), jnp.float32,
                                     quad_lo, quad_hi)
        self.W = jax.random.uniform(k_w, (H, V), jnp.float32, quad_lo, quad_hi)
        # One-time cast/pad cache: generate() never re-touches the f32 W.
        self._w_p, self._b_p, _, self._tile_n = prepare_lbm_params(
            self.W, self.b, compute_dtype=compute_dtype)

    def generate(self, hidden, scale=1.0, *, out_dtype=None):
        # vartype BINARY: sigmoid(F.linear(hidden, W.T, b) * scale)
        #               = sigmoid((hidden @ W + b) * scale)
        return lbm_generate_prepared(hidden, self._w_p, self._b_p, self.V,
                                     scale, spin=False, tile_n=self._tile_n,
                                     out_dtype=out_dtype)

    def forward(self, *args, **kwargs):
        return None


if __name__ == "__main__":
    key = jax.random.PRNGKey(0)
    k_model, k_hidden, k_h2, k_w2, k_b2 = jax.random.split(key, 5)

    # --- small test (cached bf16 params, bf16 output, scale != 1) ---
    V, H, B = 128, 64, 8
    model = LimitedBoltzmannMachineJAX(V, H, k_model)
    hidden = jax.random.uniform(k_hidden, (B, H), jnp.float32)

    out = jax.block_until_ready(model.generate(hidden, scale=1.5))
    ref = jax.nn.sigmoid((hidden @ model.W + model.b) * 1.5)
    assert out.shape == (B, V)
    assert jnp.allclose(out.astype(jnp.float32), ref, atol=2e-2, rtol=0), \
        "bf16 path mismatch vs reference"

    # --- ragged / multi-tile test (f32 compute + f32 output) ---
    V2, H2, B2 = 384, 96, 260
    hidden2 = jax.random.uniform(k_h2, (B2, H2), jnp.float32)
    W2 = jax.random.uniform(k_w2, (H2, V2), jnp.float32, -0.1, 0.1)
    b2 = jax.random.uniform(k_b2, (V2,), jnp.float32, -0.1, 0.1)

    out2 = jax.block_until_ready(
        lbm_generate(hidden2, W2, b2, scale=1.0,
                     compute_dtype=jnp.float32, out_dtype=jnp.float32))
    ref2 = jax.nn.sigmoid(hidden2 @ W2 + b2)
    assert out2.shape == (B2, V2)
    assert jnp.allclose(out2, ref2, atol=1e-3, rtol=0), \
        "f32 path mismatch vs reference"

    # forward() keeps the original module semantics (no-op).
    assert model.forward(hidden) is None

    print("KERNEL_OK")
</pallas_src>

<mosaic_0001>
module attributes {stable_mosaic.version = 11 : i64} {
  func.func @_lbm_generate_kernel(%arg0: i32, %arg1: i32, %arg2: memref<16x64xbf16, #tpu.memory_space<vmem>>, %arg3: memref<64x128xbf16, #tpu.memory_space<vmem>>, %arg4: memref<1x128xf32, #tpu.memory_space<vmem>>, %arg5: memref<16x128xbf16, #tpu.memory_space<vmem>>) attributes {dimension_semantics = [#tpu.dimension_semantics<parallel>, #tpu.dimension_semantics<parallel>], iteration_bounds = array<i64: 1, 1>, scalar_prefetch = 0 : i64, scratch_operands = 0 : i64, tpu.core_type = #tpu.core_type<tc>, window_params = [{transform_indices = @transform_0, window_bounds = array<i64: 16, 64>}, {transform_indices = @transform_1, window_bounds = array<i64: 64, 128>}, {transform_indices = @transform_2, window_bounds = array<i64: 1, 128>}, {transform_indices = @transform_3, window_bounds = array<i64: 16, 128>}]} {
    %c0 = arith.constant 0 : index
    %c0_0 = arith.constant 0 : index
    %0 = vector.load %arg2[%c0, %c0_0] : memref<16x64xbf16, #tpu.memory_space<vmem>>, vector<16x64xbf16>
    %c0_1 = arith.constant 0 : index
    %c0_2 = arith.constant 0 : index
    %1 = vector.load %arg3[%c0_1, %c0_2] : memref<64x128xbf16, #tpu.memory_space<vmem>>, vector<64x128xbf16>
    %cst = arith.constant dense<0.000000e+00> : vector<16x128xf32>
    %2 = tpu.matmul %0, %1, %cst {dimension_numbers = #tpu.dot_dimension_numbers<[1], [0], [0], [1], [0, 0, 1, 1], [], []>} : vector<16x64xbf16>, vector<64x128xbf16>, vector<16x128xf32> -> vector<16x128xf32>
    %c0_3 = arith.constant 0 : index
    %c0_4 = arith.constant 0 : index
    %3 = vector.load %arg4[%c0_3, %c0_4] : memref<1x128xf32, #tpu.memory_space<vmem>>, vector<1x128xf32>
    %4 = vector.broadcast %3 : vector<1x128xf32> to vector<16x128xf32>
    %5 = arith.addf %2, %4 : vector<16x128xf32>
    %cst_5 = arith.constant 1.500000e+00 : f32
    %6 = vector.broadcast %cst_5 : f32 to vector<16x128xf32>
    %7 = arith.mulf %5, %6 : vector<16x128xf32>
    %cst_6 = arith.constant 5.000000e-01 : f32
    %8 = vector.broadcast %cst_6 : f32 to vector<16x128xf32>
    %9 = arith.mulf %8, %7 : vector<16x128xf32>
    %10 = math.tanh %9 : vector<16x128xf32>
    %cst_7 = arith.constant 5.000000e-01 : f32
    %11 = vector.broadcast %cst_7 : f32 to vector<16x128xf32>
    %12 = arith.mulf %11, %10 : vector<16x128xf32>
    %cst_8 = arith.constant 5.000000e-01 : f32
    %13 = vector.broadcast %cst_8 : f32 to vector<16x128xf32>
    %14 = arith.addf %12, %13 : vector<16x128xf32>
    %15 = arith.truncf %14 : vector<16x128xf32> to vector<16x128xbf16>
    %c0_9 = arith.constant 0 : index
    %c0_10 = arith.constant 0 : index
    %16 = vector.load %arg5[%c0_9, %c0_10] : memref<16x128xbf16, #tpu.memory_space<vmem>>, vector<16x128xbf16>
    tpu.vector_store %arg5[%c0_9, %c0_10], %15 {strides = array<i32>} : memref<16x128xbf16, #tpu.memory_space<vmem>>, vector<16x128xbf16>,
    return
  }
  func.func @transform_0(%arg0: i32, %arg1: i32) -> (i32, i32) {
    %c0_i32 = arith.constant 0 : i32
    %c0_i32_0 = arith.constant 0 : i32
    return %arg1, %c0_i32 : i32, i32
  }
  func.func @transform_1(%arg0: i32, %arg1: i32) -> (i32, i32) {
    %c0_i32 = arith.constant 0 : i32
    %c0_i32_0 = arith.constant 0 : i32
    return %c0_i32, %arg0 : i32, i32
  }
  func.func @transform_2(%arg0: i32, %arg1: i32) -> (i32, i32) {
    %c0_i32 = arith.constant 0 : i32
    %c0_i32_0 = arith.constant 0 : i32
    return %c0_i32, %arg0 : i32, i32
  }
  func.func @transform_3(%arg0: i32, %arg1: i32) -> (i32, i32) {
    %c0_i32 = arith.constant 0 : i32
    return %arg1, %arg0 : i32, i32
  }
}

</mosaic_0001>

<llo_original>
// kernel: tpu_custom_call.1
$region0: #{tpu_custom_call.1}
  #allocation0 [shape = 'u32[]', space=smem, size = 0x4, offset = 0x4, fixed_abs, tag = 'smem constant byte address 0x4 - core index']
  #allocation1 [shape = 'u32[144,128]{1,0:T(1,128)}', space=vmem, size = 0x12000, scoped, tag = 'internal scratch']
  %s0 = inlined_call_operand.hbm [shape: bf16[16,64], index: 0, kind: input, shape index: {}]
  %s1 = inlined_call_operand.hbm [shape: bf16[64,128], index: 1, kind: input, shape index: {}]
  %s2 = inlined_call_operand.vmem [shape: f32[1,128], index: 2, kind: input, shape index: {}]
  %s3 = inlined_call_operand.hbm [shape: bf16[16,128], index: 3, kind: output, shape index: {}]
  %s4 = sld [smem:[#allocation0]]
  $region30: #{tpu_custom_call.1} parent=0
    _
  %s6 = ssub.s32 1, %s4
  %s7 = scalar_select 0, %s6, %s4
  $region1: #{tpu_custom_call.1} parent=0
    #allocation2 [shape = 'u8[4096]{0}', space=vmem, size = 0x1000, scoped, tag = 'input window, operand 0, single buffered']
    #allocation3 [shape = 's32[1]{0}', space=sflag, size = 0x4, scoped, tag = 'scoped memory for tpu_custom_call.1']
    #allocation4 [shape = 's32[1]{0}', space=sflag, size = 0x4, scoped, tag = 'scoped memory for tpu_custom_call.1']
    #allocation5 [shape = 'u8[16384]{0}', space=vmem, size = 0x4000, scoped, tag = 'input window, operand 1, single buffered']
    #allocation6 [shape = 's32[1]{0}', space=sflag, size = 0x4, scoped, tag = 'scoped memory for tpu_custom_call.1']
    #allocation7 [shape = 'u8[4096]{0}', space=vmem, size = 0x1000, scoped, tag = 'output window, operand 0, single buffered']
    %8 = vsyncpa [#allocation3], 0
    %9 = vsyncpa [#allocation6], 0
    %10 = vsyncpa [#allocation4], 0
    // Predicated region
    $region2: #{tpu_custom_call.1} parent=1 // pred_check
      _
    $region3: #{tpu_custom_call.1} parent=1 // pred_check_branch
      %12 = sbr.rel (0) target = $region5
    $region4: #{tpu_custom_call.1} parent=1 // pred_region
      %s14 = ssub.s32 128, 128
      %15 = vsyncadd [#allocation3], %s14
      %s16 = sshll.u32 [#allocation2], 4
      %s17 = int_to_ptr.vmem [resolvable:$true] %s16
      %22 = dma.hbm_to_vmem [thread:$0]  %s0, 128, %s17, [#allocation3], 64, 64, 4
    $region5: #{tpu_custom_call.1} parent=1 // pred_fallthru
      _
    // Predicated region
    $region6: #{tpu_custom_call.1} parent=1 // pred_check
      _
    $region7: #{tpu_custom_call.1} parent=1 // pred_check_branch
      %24 = sbr.rel (0) target = $region9
    $region8: #{tpu_custom_call.1} parent=1 // pred_region
      %s26 = ssub.s32 512, 512
      %27 = vsyncadd [#allocation6], %s26
      %s28 = sshll.u32 [#allocation5], 4
      %s29 = int_to_ptr.vmem [resolvable:$true] %s28
      %34 = dma.hbm_to_vmem [thread:$0]  %s1, 512, %s29, [#allocation6], 64, 64, 4
    $region9: #{tpu_custom_call.1} parent=1 // pred_fallthru
      _
    // Predicated region
    $region10: #{tpu_custom_call.1} parent=1 // pred_check
      _
    $region11: #{tpu_custom_call.1} parent=1 // pred_check_branch
      %36 = sbr.rel (0) target = $region13
    $region12: #{tpu_custom_call.1} parent=1 // pred_region
      _
    $region13: #{tpu_custom_call.1} parent=1 // pred_fallthru
      _
    // Predicated region
    $region14: #{tpu_custom_call.1} parent=1 // pred_check
      _
    $region15: #{tpu_custom_call.1} parent=1 // pred_check_branch
      %38 = sbr.rel (0) target = $region17
    $region16: #{tpu_custom_call.1} parent=1 // pred_region
      %39 = dma.done [#allocation3], 128
    $region17: #{tpu_custom_call.1} parent=1 // pred_fallthru
      _
    // Predicated region
    $region18: #{tpu_custom_call.1} parent=1 // pred_check
      _
    $region19: #{tpu_custom_call.1} parent=1 // pred_check_branch
      %41 = sbr.rel (0) target = $region21
    $region20: #{tpu_custom_call.1} parent=1 // pred_region
      %42 = dma.done [#allocation6], 512
    $region21: #{tpu_custom_call.1} parent=1 // pred_fallthru
      _
    %v44 = vld [vmem:[#allocation2] sm:$0xf]
    %v45 = vld [vmem:[#allocation2 + $0x4] sm:$0xf]
    %v46 = vld [vmem:[#allocation5] sm:$0xf]
    %v47 = vld [vmem:[#allocation5 + $0x4] sm:$0xf]
    %v48 = vld [vmem:[#allocation5 + $0x8] sm:$0xf]
    %v49 = vld [vmem:[#allocation5 + $0xc] sm:$0xf]
    %v50 = vld [vmem:[#allocation5 + $0x10] sm:$0xf]
    %v51 = vld [vmem:[#allocation5 + $0x14] sm:$0xf]
    %v52 = vld [vmem:[#allocation5 + $0x18] sm:$0xf]
    %v53 = vld [vmem:[#allocation5 + $0x1c] sm:$0xf]
    %v54 = vld [vmem:[%s2] sm:$0x1]
    %v56 = vlaneseq
    %v57 = vshrl.u32 %v56, 7
    %v58 = vsub.s32 0, %v57
    %v59 = vrot.slane %v54, %v58
    %v63 = vunpack.c.l.b16 %v44
    %v64 = vunpack.c.l.b16 %v45
    %v65 = vpack.c.b16 %v64, %v63
    %v74 = vunpack.c.l.b16 %v46
    %v75 = vunpack.c.l.b16 %v47
    %v76 = vunpack.c.l.b16 %v48
    %v77 = vunpack.c.l.b16 %v49
    %v78 = vunpack.c.l.b16 %v50
    %v79 = vunpack.c.l.b16 %v51
    %v80 = vunpack.c.l.b16 %v52
    %v81 = vunpack.c.l.b16 %v53
    %v82 = vpack.c.b16 %v75, %v74
    %v83 = vpack.c.b16 %v77, %v76
    %v84 = vpack.c.b16 %v79, %v78
    %v85 = vpack.c.b16 %v81, %v80
    %vm90 = vcmask 523264
    %v92 = vsel %vm90, %v65, 0
    %94 = vmatprep.subr.bf16.mxu0 0
    %95 = vmatpush1.bf16.msra.mxu0 0
    %96 = vmatprep.subr.bf16.mxu0 0
    %97 = vmatpush1.bf16.msra.mxu0 0
    %98 = vmatprep.subr.bf16.mxu0 0
    %99 = vmatpush1.bf16.msra.mxu0 0
    %100 = vmatprep.subr.bf16.mxu0 0
    %101 = vmatpush1.bf16.msra.mxu0 0
    %102 = vmatprep.subr.bf16.mxu0 0
    %103 = vmatpush1.bf16.msra.mxu0 %v85
    %104 = vmatprep.subr.bf16.mxu0 0
    %105 = vmatpush1.bf16.msra.mxu0 %v84
    %106 = vmatprep.subr.bf16.mxu0 0
    %107 = vmatpush1.bf16.msra.mxu0 %v83
    %108 = vmatprep.subr.bf16.mxu0 0
    %109 = vmatpush1.bf16.msra.mxu0 %v82
    %110 = vmatprep.subr.bf16.mxu0 0
    %111 = vmatpush2.bf16.msra.mxu0 0
    %112 = vmatprep.subr.bf16.mxu0 0
    %113 = vmatpush2.bf16.msra.mxu0 0
    %114 = vmatprep.subr.bf16.mxu0 0
    %115 = vmatpush2.bf16.msra.mxu0 0
    %116 = vmatprep.subr.bf16.mxu0 0
    %117 = vmatpush2.bf16.msra.mxu0 0
    %118 = vmatprep.subr.bf16.mxu0 0
    %119 = vmatpush2.bf16.msra.mxu0 0
    %120 = vmatprep.subr.bf16.mxu0 0
    %121 = vmatpush2.bf16.msra.mxu0 0
    %122 = vmatprep.subr.bf16.mxu0 0
    %123 = vmatpush2.bf16.msra.mxu0 0
    %124 = vmatprep.subr.bf16.mxu0 0
    %125 = vmatpush2.bf16.msra.mxu0 0
    %126 = vmatprep.mubr.bf16.mxu0 0
    %127 = vmatmul.mubr.bf16.gmra.mxu0 %v92
    %v128 = vpop.f32.mrf.mxu0
    %v129 = vadd.f32 %v59, %v128
    %v130 = vpop.f32.mrf.mxu0
    %v131 = vpop.f32.mrf.mxu0
    %v132 = vadd.f32 %v59, %v131
    %v133 = vpop.f32.mrf.mxu0
    %134 = vdwg.mxu0
    %v135 = vmul.f32 %v129, 1.5
    %v136 = vmul.f32 %v132, 1.5
    %v137 = vmul.f32 %v135, 0.5
    %v138 = vmul.f32 %v136, 0.5
    %v139 = vtanh.pop %v137
    %v140 = vtanh.pop %v138
    %v141 = vmul.f32 %v139, 0.5
    %v142 = vmul.f32 %v140, 0.5
    %v143 = vadd.f32 %v141, 0.5
    %v144 = vadd.f32 %v142, 0.5
    %v145 = vpack.c.bf16 %v144, %v143
    %v147 = vunpack.c.l.b16 %v145
    %v148 = vunpack.c.h.b16 %v145
    %v149 = vpack.c.b16 %v147, %v147
    %v150 = vpack.c.b16 %v148, %v148
    %153 = vst [vmem:[#allocation7] sm:$0xf] %v149
    %154 = vst [vmem:[#allocation7 + $0x4] sm:$0xf] %v150
    // Predicated region
    $region22: #{tpu_custom_call.1} parent=1 // pred_check
      _
    $region23: #{tpu_custom_call.1} parent=1 // pred_check_branch
      %156 = sbr.rel (0) target = $region25
    $region24: #{tpu_custom_call.1} parent=1 // pred_region
      %s158 = ssub.s32 128, 128
      %159 = vsyncadd [#allocation4], %s158
      %s160 = sshll.u32 [#allocation7], 4
      %s161 = int_to_ptr.vmem [resolvable:$true] %s160
      %166 = dma.vmem_to_hbm [thread:$0]  %s161, 128, %s3, [#allocation4], 64, 64, 4
    $region25: #{tpu_custom_call.1} parent=1 // pred_fallthru
      _
    // Predicated region
    $region26: #{tpu_custom_call.1} parent=1 // pred_check
      _
    $region27: #{tpu_custom_call.1} parent=1 // pred_check_branch
      %168 = sbr.rel (0) target = $region29
    $region28: #{tpu_custom_call.1} parent=1 // pred_region
      %169 = dma.done [#allocation4], 128
    $region29: #{tpu_custom_call.1} parent=1 // pred_fallthru
      _
    %170 = vsyncpa [#allocation3], 1
    %171 = vsyncpa [#allocation6], 1
    %172 = vsyncpa [#allocation4], 1

</llo_original>
